<compile_context>
chip_gen: v7x
topology: tpu7x:2x2x1
jax: 0.10.0
libtpu: 0.0.40
codegen_flags: <defaults>
</compile_context>

<pallas_src>
import jax
import jax.numpy as jnp
from jax.experimental import pallas as pl
from jax.experimental.pallas import tpu as pltpu

B, T = 64, 256  # batch rows (sublane-aligned, mult of 8), targets per row (lane-aligned, 2*128)


def r2loss_kernel(w_ref, labels_ref, preds_ref, out_ref):
    # Upcast on load: inputs may arrive bf16 (halved DMA); all math is f32 (v5e-safe).
    labels = labels_ref[...].astype(jnp.float32)                       # (B, T)
    preds = preds_ref[...].astype(jnp.float32)                         # (B, T)
    w = w_ref[0]                                                       # scalar from SMEM
    b, t = labels.shape

    # numerator: sum(mask * (preds - labels)^2, dim=1)
    diff = preds - labels
    mask = jnp.where(labels <= 0.0, w, 1.0)
    num = jnp.sum(mask * (diff * diff), axis=1, keepdims=True)         # (B, 1)

    # denominator: sum((labels - labels.mean())^2, dim=1), centered form (no cancellation)
    gmean = jnp.sum(labels, keepdims=True) * (1.0 / (b * t))           # (1, 1) global mean
    centered = labels - gmean                                          # (B, T)
    den = jnp.sum(centered * centered, axis=1, keepdims=True)          # (B, 1)

    # NOTE: den == 0 (a row equal to the global mean everywhere) yields inf/nan, exactly
    # matching the PyTorch reference; no eps guard added to preserve semantics.
    ratio = num / den                                                  # (B, 1)

    # Scalar mean over the batch, written straight to SMEM (no padded VMEM tile writeback).
    out_ref[0, 0] = jnp.sum(ratio) * (1.0 / b)


@jax.jit
def r2loss(labels, preds, w):
    b, t = labels.shape
    w_arr = jnp.asarray(w, jnp.float32).reshape((1,))
    smem = pl.BlockSpec(memory_space=pltpu.MemorySpace.SMEM)
    vmem = pl.BlockSpec(memory_space=pltpu.MemorySpace.VMEM)
    bytes_in = (labels.size * labels.dtype.itemsize
                + preds.size * preds.dtype.itemsize
                + w_arr.size * w_arr.dtype.itemsize)
    out = pl.pallas_call(
        r2loss_kernel,
        out_shape=jax.ShapeDtypeStruct((1, 1), jnp.float32),
        in_specs=[smem, vmem, vmem],
        out_specs=smem,
        cost_estimate=pl.CostEstimate(
            flops=8 * b * t,            # diff, sq, mask-mul, row sums, centering, sq, sums
            transcendentals=0,
            bytes_accessed=bytes_in + 4,
        ),
    )(w_arr, labels, preds)
    return out[0, 0]


# ----------------------------- pure-JAX reference (PyTorch-exact) -----------------------------
def reference_r2loss(labels, preds, w):
    labels = labels.astype(jnp.float32)
    preds = preds.astype(jnp.float32)
    mask = jnp.where(labels <= 0.0, jnp.float32(w), jnp.float32(1.0))
    num = jnp.sum(mask * (preds - labels) ** 2, axis=1)
    den = jnp.sum((labels - jnp.mean(labels)) ** 2, axis=1)
    return jnp.mean(num / den)


if __name__ == "__main__":
    key = jax.random.PRNGKey(0)
    k1, k2 = jax.random.split(key)
    # Non-centered labels (mean ~0.75) exercise the centered-denominator path; ~22% of labels
    # are still <= 0 so the mask branch is active.
    labels = jax.random.normal(k1, (B, T), jnp.float32) + 0.75
    preds = labels + 0.1 * jax.random.normal(k2, (B, T), jnp.float32)
    w = 0.5

    # f32 path (PyTorch-exact comparison)
    out = r2loss(labels, preds, w)
    jax.block_until_ready(out)
    ref = reference_r2loss(labels, preds, w)
    assert out.shape == ()
    assert bool(jnp.isfinite(out))
    assert jnp.allclose(out, ref, atol=1e-5, rtol=1e-4), (float(out), float(ref))

    # native-bf16 inputs (halved input DMA); kernel upcasts on load, reference sees same values
    labels_bf16 = labels.astype(jnp.bfloat16)
    preds_bf16 = preds.astype(jnp.bfloat16)
    out_bf16 = r2loss(labels_bf16, preds_bf16, w)
    jax.block_until_ready(out_bf16)
    ref_bf16 = reference_r2loss(labels_bf16, preds_bf16, w)
    assert bool(jnp.isfinite(out_bf16))
    assert jnp.allclose(out_bf16, ref_bf16, atol=1e-4, rtol=1e-3), (float(out_bf16), float(ref_bf16))

    print("KERNEL_OK")
</pallas_src>

<mosaic_0001>
module attributes {stable_mosaic.version = 11 : i64} {
  func.func @r2loss_kernel(%arg0: memref<1xf32, #tpu.memory_space<smem>>, %arg1: memref<64x256xf32, #tpu.memory_space<vmem>>, %arg2: memref<64x256xf32, #tpu.memory_space<vmem>>, %arg3: memref<1x1xf32, #tpu.memory_space<smem>>) attributes {dimension_semantics = [], scalar_prefetch = 0 : i64, scratch_operands = 0 : i64, tpu.core_type = #tpu.core_type<tc>} {
    %c0 = arith.constant 0 : index
    %c0_0 = arith.constant 0 : index
    %0 = vector.load %arg1[%c0, %c0_0] : memref<64x256xf32, #tpu.memory_space<vmem>>, vector<64x256xf32>
    %c0_1 = arith.constant 0 : index
    %c0_2 = arith.constant 0 : index
    %1 = vector.load %arg2[%c0_1, %c0_2] : memref<64x256xf32, #tpu.memory_space<vmem>>, vector<64x256xf32>
    %c0_3 = arith.constant 0 : index
    %2 = memref.load %arg0[%c0_3] : memref<1xf32, #tpu.memory_space<smem>>
    %3 = arith.subf %1, %0 : vector<64x256xf32>
    %cst = arith.constant 0.000000e+00 : f32
    %4 = vector.broadcast %cst : f32 to vector<64x256xf32>
    %5 = arith.cmpf ole, %0, %4 : vector<64x256xf32>
    %cst_4 = arith.constant 1.000000e+00 : f32
    %6 = vector.broadcast %2 : f32 to vector<64x256xf32>
    %7 = vector.broadcast %cst_4 : f32 to vector<64x256xf32>
    %8 = arith.select %5, %6, %7 : vector<64x256xi1>, vector<64x256xf32>
    %9 = arith.mulf %3, %3 : vector<64x256xf32>
    %10 = arith.mulf %8, %9 : vector<64x256xf32>
    %cst_5 = arith.constant dense<0.000000e+00> : vector<64xf32>
    %11 = vector.multi_reduction <add>, %10, %cst_5 [1] : vector<64x256xf32> to vector<64xf32>
    %12 = vector.shape_cast %11 : vector<64xf32> to vector<64x1xf32>
    %13 = vector.shape_cast %0 : vector<64x256xf32> to vector<1x64x256xf32>
    %cst_6 = arith.constant dense<0.000000e+00> : vector<1xf32>
    %14 = vector.multi_reduction <add>, %13, %cst_6 [1, 2] : vector<1x64x256xf32> to vector<1xf32>
    %15 = vector.shape_cast %14 : vector<1xf32> to vector<1x1x1xf32>
    %16 = vector.extract %15[0, 0, 0] : f32 from vector<1x1x1xf32>
    %17 = vector.broadcast %16 : f32 to vector<1x1xf32>
    %cst_7 = arith.constant 6.10351563E-5 : f32
    %18 = vector.broadcast %cst_7 : f32 to vector<1x1xf32>
    %19 = arith.mulf %17, %18 : vector<1x1xf32>
    %20 = vector.broadcast %19 : vector<1x1xf32> to vector<64x256xf32>
    %21 = arith.subf %0, %20 : vector<64x256xf32>
    %22 = arith.mulf %21, %21 : vector<64x256xf32>
    %cst_8 = arith.constant dense<0.000000e+00> : vector<64xf32>
    %23 = vector.multi_reduction <add>, %22, %cst_8 [1] : vector<64x256xf32> to vector<64xf32>
    %24 = vector.shape_cast %23 : vector<64xf32> to vector<64x1xf32>
    %25 = arith.divf %12, %24 : vector<64x1xf32>
    %26 = vector.shape_cast %25 : vector<64x1xf32> to vector<1x64x1xf32>
    %cst_9 = arith.constant dense<0.000000e+00> : vector<1xf32>
    %27 = vector.multi_reduction <add>, %26, %cst_9 [1, 2] : vector<1x64x1xf32> to vector<1xf32>
    %28 = vector.shape_cast %27 : vector<1xf32> to vector<1x1x1xf32>
    %29 = vector.extract %28[0, 0, 0] : f32 from vector<1x1x1xf32>
    %cst_10 = arith.constant 1.562500e-02 : f32
    %30 = arith.mulf %29, %cst_10 : f32
    %c0_11 = arith.constant 0 : index
    %c0_12 = arith.constant 0 : index
    %31 = memref.load %arg3[%c0_11, %c0_12] : memref<1x1xf32, #tpu.memory_space<smem>>
    memref.store %30, %arg3[%c0_11, %c0_12] : memref<1x1xf32, #tpu.memory_space<smem>>
    return
  }
}

</mosaic_0001>

<llo_original>
// kernel: r2loss.1
$region0: #{r2loss.1}
  #allocation0 [shape = 'u32[]', space=smem, size = 0x4, offset = 0x4, fixed_abs, tag = 'smem constant byte address 0x4 - core index']
  #allocation1 [shape = 'u32[144,128]{1,0:T(1,128)}', space=vmem, size = 0x12000, scoped, tag = 'internal scratch']
  #allocation2 [shape = 'f32[1]{0:T(128)S(6)}', space=smem, size = 0x200, scoped, tag = 'scoped memory for r2loss.1']
  %s0 = inlined_call_operand.<no memory space> [shape: f32[1], index: 0, kind: input, shape index: {}]
  %s1 = inlined_call_operand.hbm [shape: f32[64,256], index: 1, kind: input, shape index: {}]
  %s2 = inlined_call_operand.hbm [shape: f32[64,256], index: 2, kind: input, shape index: {}]
  %s3 = inlined_call_operand.hbm [shape: f32[1,1], index: 3, kind: output, shape index: {}]
  %s4 = sld [smem:[#allocation0]]
  $region30: #{r2loss.1} parent=0
    _
  %s6 = ssub.s32 1, %s4
  %s7 = scalar_select 0, %s6, %s4
  %8 = sst [smem:[#allocation2]] %s0
  $region1: #{r2loss.1} parent=0
    #allocation3 [shape = 'u8[65536]{0}', space=vmem, size = 0x10000, scoped, tag = 'input window, operand 1, single buffered']
    #allocation4 [shape = 's32[1]{0}', space=sflag, size = 0x4, scoped, tag = 'scoped memory for r2loss.1']
    #allocation5 [shape = 's32[1]{0}', space=sflag, size = 0x4, scoped, tag = 'scoped memory for r2loss.1']
    #allocation6 [shape = 'u8[65536]{0}', space=vmem, size = 0x10000, scoped, tag = 'input window, operand 2, single buffered']
    #allocation7 [shape = 's32[1]{0}', space=sflag, size = 0x4, scoped, tag = 'scoped memory for r2loss.1']
    #allocation8 [shape = 'u8[512]{0}', space=smem, size = 0x200, scoped, tag = 'output window, operand 0, single buffered']
    %9 = vsyncpa [#allocation4], 0
    %10 = vsyncpa [#allocation7], 0
    %11 = vsyncpa [#allocation5], 0
    // Predicated region
    $region2: #{r2loss.1} parent=1 // pred_check
      _
    $region3: #{r2loss.1} parent=1 // pred_check_branch
      %13 = sbr.rel (0) target = $region5
    $region4: #{r2loss.1} parent=1 // pred_region
      _
    $region5: #{r2loss.1} parent=1 // pred_fallthru
      _
    // Predicated region
    $region6: #{r2loss.1} parent=1 // pred_check
      _
    $region7: #{r2loss.1} parent=1 // pred_check_branch
      %15 = sbr.rel (0) target = $region9
    $region8: #{r2loss.1} parent=1 // pred_region
      %s17 = ssub.s32 2048, 2048
      %18 = vsyncadd [#allocation4], %s17
      %s19 = sshll.u32 [#allocation3], 4
      %s20 = int_to_ptr.vmem [resolvable:$true] %s19
      %25 = dma.hbm_to_vmem [thread:$0]  %s1, 2048, %s20, [#allocation4], 256, 256, 16
    $region9: #{r2loss.1} parent=1 // pred_fallthru
      _
    // Predicated region
    $region10: #{r2loss.1} parent=1 // pred_check
      _
    $region11: #{r2loss.1} parent=1 // pred_check_branch
      %27 = sbr.rel (0) target = $region13
    $region12: #{r2loss.1} parent=1 // pred_region
      %s29 = ssub.s32 2048, 2048
      %30 = vsyncadd [#allocation7], %s29
      %s31 = sshll.u32 [#allocation6], 4
      %s32 = int_to_ptr.vmem [resolvable:$true] %s31
      %37 = dma.hbm_to_vmem [thread:$0]  %s2, 2048, %s32, [#allocation7], 256, 256, 16
    $region13: #{r2loss.1} parent=1 // pred_fallthru
      _
    // Predicated region
    $region14: #{r2loss.1} parent=1 // pred_check
      _
    $region15: #{r2loss.1} parent=1 // pred_check_branch
      %39 = sbr.rel (0) target = $region17
    $region16: #{r2loss.1} parent=1 // pred_region
      %40 = dma.done [#allocation4], 2048
    $region17: #{r2loss.1} parent=1 // pred_fallthru
      _
    // Predicated region
    $region18: #{r2loss.1} parent=1 // pred_check
      _
    $region19: #{r2loss.1} parent=1 // pred_check_branch
      %42 = sbr.rel (0) target = $region21
    $region20: #{r2loss.1} parent=1 // pred_region
      %43 = dma.done [#allocation7], 2048
    $region21: #{r2loss.1} parent=1 // pred_fallthru
      _
    %v44 = vld [vmem:[#allocation3] sm:$0xff]
    %v45 = vld [vmem:[#allocation3 + $0x8] sm:$0xff]
    %v46 = vld [vmem:[#allocation3 + $0x10] sm:$0xff]
    %v47 = vld [vmem:[#allocation3 + $0x18] sm:$0xff]
    %v48 = vld [vmem:[#allocation3 + $0x20] sm:$0xff]
    %v49 = vld [vmem:[#allocation3 + $0x28] sm:$0xff]
    %v50 = vld [vmem:[#allocation3 + $0x30] sm:$0xff]
    %v51 = vld [vmem:[#allocation3 + $0x38] sm:$0xff]
    %v52 = vld [vmem:[#allocation3 + $0x40] sm:$0xff]
    %v53 = vld [vmem:[#allocation3 + $0x48] sm:$0xff]
    %v54 = vld [vmem:[#allocation3 + $0x50] sm:$0xff]
    %v55 = vld [vmem:[#allocation3 + $0x58] sm:$0xff]
    %v56 = vld [vmem:[#allocation3 + $0x60] sm:$0xff]
    %v57 = vld [vmem:[#allocation3 + $0x68] sm:$0xff]
    %v58 = vld [vmem:[#allocation3 + $0x70] sm:$0xff]
    %v59 = vld [vmem:[#allocation3 + $0x78] sm:$0xff]
    %v60 = vld [vmem:[#allocation6] sm:$0xff]
    %v61 = vld [vmem:[#allocation6 + $0x8] sm:$0xff]
    %v62 = vld [vmem:[#allocation6 + $0x10] sm:$0xff]
    %v63 = vld [vmem:[#allocation6 + $0x18] sm:$0xff]
    %v64 = vld [vmem:[#allocation6 + $0x20] sm:$0xff]
    %v65 = vld [vmem:[#allocation6 + $0x28] sm:$0xff]
    %v66 = vld [vmem:[#allocation6 + $0x30] sm:$0xff]
    %v67 = vld [vmem:[#allocation6 + $0x38] sm:$0xff]
    %v68 = vld [vmem:[#allocation6 + $0x40] sm:$0xff]
    %v69 = vld [vmem:[#allocation6 + $0x48] sm:$0xff]
    %v70 = vld [vmem:[#allocation6 + $0x50] sm:$0xff]
    %v71 = vld [vmem:[#allocation6 + $0x58] sm:$0xff]
    %v72 = vld [vmem:[#allocation6 + $0x60] sm:$0xff]
    %v73 = vld [vmem:[#allocation6 + $0x68] sm:$0xff]
    %v74 = vld [vmem:[#allocation6 + $0x70] sm:$0xff]
    %v75 = vld [vmem:[#allocation6 + $0x78] sm:$0xff]
    %s76 = sld [smem:[#allocation2]]
    %v77 = vsub.f32 %v60, %v44
    %v78 = vsub.f32 %v61, %v45
    %v79 = vsub.f32 %v62, %v46
    %v80 = vsub.f32 %v63, %v47
    %v81 = vsub.f32 %v64, %v48
    %v82 = vsub.f32 %v65, %v49
    %v83 = vsub.f32 %v66, %v50
    %v84 = vsub.f32 %v67, %v51
    %v85 = vsub.f32 %v68, %v52
    %v86 = vsub.f32 %v69, %v53
    %v87 = vsub.f32 %v70, %v54
    %v88 = vsub.f32 %v71, %v55
    %v89 = vsub.f32 %v72, %v56
    %v90 = vsub.f32 %v73, %v57
    %v91 = vsub.f32 %v74, %v58
    %v92 = vsub.f32 %v75, %v59
    %vm93 = vcmp.le.f32.partialorder %v44, 0.0
    %vm94 = vcmp.le.f32.partialorder %v45, 0.0
    %vm95 = vcmp.le.f32.partialorder %v46, 0.0
    %vm96 = vcmp.le.f32.partialorder %v47, 0.0
    %vm97 = vcmp.le.f32.partialorder %v48, 0.0
    %vm98 = vcmp.le.f32.partialorder %v49, 0.0
    %vm99 = vcmp.le.f32.partialorder %v50, 0.0
    %vm100 = vcmp.le.f32.partialorder %v51, 0.0
    %vm101 = vcmp.le.f32.partialorder %v52, 0.0
    %vm102 = vcmp.le.f32.partialorder %v53, 0.0
    %vm103 = vcmp.le.f32.partialorder %v54, 0.0
    %vm104 = vcmp.le.f32.partialorder %v55, 0.0
    %vm105 = vcmp.le.f32.partialorder %v56, 0.0
    %vm106 = vcmp.le.f32.partialorder %v57, 0.0
    %vm107 = vcmp.le.f32.partialorder %v58, 0.0
    %vm108 = vcmp.le.f32.partialorder %v59, 0.0
    %v109 = vstv %s76
    %v110 = vsel %vm93, %v109, 1.0
    %v111 = vsel %vm94, %v109, 1.0
    %v112 = vsel %vm95, %v109, 1.0
    %v113 = vsel %vm96, %v109, 1.0
    %v114 = vsel %vm97, %v109, 1.0
    %v115 = vsel %vm98, %v109, 1.0
    %v116 = vsel %vm99, %v109, 1.0
    %v117 = vsel %vm100, %v109, 1.0
    %v118 = vsel %vm101, %v109, 1.0
    %v119 = vsel %vm102, %v109, 1.0
    %v120 = vsel %vm103, %v109, 1.0
    %v121 = vsel %vm104, %v109, 1.0
    %v122 = vsel %vm105, %v109, 1.0
    %v123 = vsel %vm106, %v109, 1.0
    %v124 = vsel %vm107, %v109, 1.0
    %v125 = vsel %vm108, %v109, 1.0
    %v126 = vmul.f32 %v77, %v77
    %v127 = vmul.f32 %v78, %v78
    %v128 = vmul.f32 %v79, %v79
    %v129 = vmul.f32 %v80, %v80
    %v130 = vmul.f32 %v81, %v81
    %v131 = vmul.f32 %v82, %v82
    %v132 = vmul.f32 %v83, %v83
    %v133 = vmul.f32 %v84, %v84
    %v134 = vmul.f32 %v85, %v85
    %v135 = vmul.f32 %v86, %v86
    %v136 = vmul.f32 %v87, %v87
    %v137 = vmul.f32 %v88, %v88
    %v138 = vmul.f32 %v89, %v89
    %v139 = vmul.f32 %v90, %v90
    %v140 = vmul.f32 %v91, %v91
    %v141 = vmul.f32 %v92, %v92
    %v142 = vmul.f32 %v110, %v126
    %v143 = vmul.f32 %v111, %v127
    %v144 = vmul.f32 %v112, %v128
    %v145 = vmul.f32 %v113, %v129
    %v146 = vmul.f32 %v114, %v130
    %v147 = vmul.f32 %v115, %v131
    %v148 = vmul.f32 %v116, %v132
    %v149 = vmul.f32 %v117, %v133
    %v150 = vmul.f32 %v118, %v134
    %v151 = vmul.f32 %v119, %v135
    %v152 = vmul.f32 %v120, %v136
    %v153 = vmul.f32 %v121, %v137
    %v154 = vmul.f32 %v122, %v138
    %v155 = vmul.f32 %v123, %v139
    %v156 = vmul.f32 %v124, %v140
    %v157 = vmul.f32 %v125, %v141
    %v158 = vadd.f32 %v142, %v143
    %159 = vadd.xlane.f32.xlu0 %v158
    %v160 = vpop.xlane.xlu0 %159
    %v161 = vadd.f32 %v144, %v145
    %162 = vadd.xlane.f32.xlu0 %v161
    %v163 = vpop.xlane.xlu0 %162
    %v164 = vadd.f32 %v146, %v147
    %165 = vadd.xlane.f32.xlu0 %v164
    %v166 = vpop.xlane.xlu0 %165
    %v167 = vadd.f32 %v148, %v149
    %168 = vadd.xlane.f32.xlu0 %v167
    %v169 = vpop.xlane.xlu0 %168
    %v170 = vadd.f32 %v150, %v151
    %171 = vadd.xlane.f32.xlu0 %v170
    %v172 = vpop.xlane.xlu0 %171
    %v173 = vadd.f32 %v152, %v153
    %174 = vadd.xlane.f32.xlu0 %v173
    %v175 = vpop.xlane.xlu0 %174
    %v176 = vadd.f32 %v154, %v155
    %177 = vadd.xlane.f32.xlu0 %v176
    %v178 = vpop.xlane.xlu0 %177
    %v179 = vadd.f32 %v156, %v157
    %180 = vadd.xlane.f32.xlu0 %v179
    %v181 = vpop.xlane.xlu0 %180
    %v182 = vadd.f32 %v44, %v45
    %v183 = vadd.f32 %v182, %v46
    %v184 = vadd.f32 %v183, %v47
    %v185 = vadd.f32 %v184, %v48
    %v186 = vadd.f32 %v185, %v49
    %v187 = vadd.f32 %v186, %v50
    %v188 = vadd.f32 %v187, %v51
    %v189 = vadd.f32 %v188, %v52
    %v190 = vadd.f32 %v189, %v53
    %v191 = vadd.f32 %v190, %v54
    %v192 = vadd.f32 %v191, %v55
    %v193 = vadd.f32 %v192, %v56
    %v194 = vadd.f32 %v193, %v57
    %v195 = vadd.f32 %v194, %v58
    %v196 = vadd.f32 %v195, %v59
    %197 = vadd.xlane.f32.xlu0 %v196
    %v198 = vpop.xlane.xlu0 %197
    %v199 = vrot.slane %v198, 4
    %v200 = vadd.f32 %v198, %v199
    %v201 = vrot.slane %v200, 2
    %v202 = vadd.f32 %v200, %v201
    %v203 = vrot.slane %v202, 1
    %v204 = vadd.f32 %v202, %v203
    %s205 = vtos %v204
    %v206 = vstv %s205
    %v207 = vmul.f32 %v206, 6.1035156e-05
    %v208 = vsub.f32 %v44, %v207
    %v209 = vsub.f32 %v45, %v207
    %v210 = vsub.f32 %v46, %v207
    %v211 = vsub.f32 %v47, %v207
    %v212 = vsub.f32 %v48, %v207
    %v213 = vsub.f32 %v49, %v207
    %v214 = vsub.f32 %v50, %v207
    %v215 = vsub.f32 %v51, %v207
    %v216 = vsub.f32 %v52, %v207
    %v217 = vsub.f32 %v53, %v207
    %v218 = vsub.f32 %v54, %v207
    %v219 = vsub.f32 %v55, %v207
    %v220 = vsub.f32 %v56, %v207
    %v221 = vsub.f32 %v57, %v207
    %v222 = vsub.f32 %v58, %v207
    %v223 = vsub.f32 %v59, %v207
    %v224 = vmul.f32 %v208, %v208
    %v225 = vmul.f32 %v209, %v209
    %v226 = vmul.f32 %v210, %v210
    %v227 = vmul.f32 %v211, %v211
    %v228 = vmul.f32 %v212, %v212
    %v229 = vmul.f32 %v213, %v213
    %v230 = vmul.f32 %v214, %v214
    %v231 = vmul.f32 %v215, %v215
    %v232 = vmul.f32 %v216, %v216
    %v233 = vmul.f32 %v217, %v217
    %v234 = vmul.f32 %v218, %v218
    %v235 = vmul.f32 %v219, %v219
    %v236 = vmul.f32 %v220, %v220
    %v237 = vmul.f32 %v221, %v221
    %v238 = vmul.f32 %v222, %v222
    %v239 = vmul.f32 %v223, %v223
    %v240 = vadd.f32 %v224, %v225
    %241 = vadd.xlane.f32.xlu0 %v240
    %v242 = vpop.xlane.xlu0 %241
    %v243 = vadd.f32 %v226, %v227
    %244 = vadd.xlane.f32.xlu0 %v243
    %v245 = vpop.xlane.xlu0 %244
    %v246 = vadd.f32 %v228, %v229
    %247 = vadd.xlane.f32.xlu0 %v246
    %v248 = vpop.xlane.xlu0 %247
    %v249 = vadd.f32 %v230, %v231
    %250 = vadd.xlane.f32.xlu0 %v249
    %v251 = vpop.xlane.xlu0 %250
    %v252 = vadd.f32 %v232, %v233
    %253 = vadd.xlane.f32.xlu0 %v252
    %v254 = vpop.xlane.xlu0 %253
    %v255 = vadd.f32 %v234, %v235
    %256 = vadd.xlane.f32.xlu0 %v255
    %v257 = vpop.xlane.xlu0 %256
    %v258 = vadd.f32 %v236, %v237
    %259 = vadd.xlane.f32.xlu0 %v258
    %v260 = vpop.xlane.xlu0 %259
    %v261 = vadd.f32 %v238, %v239
    %262 = vadd.xlane.f32.xlu0 %v261
    %v263 = vpop.xlane.xlu0 %262
    %v264 = vrcp.pop %v242
    %v265 = vmul.f32 %v160, %v264
    %v266 = vrcp.pop %v245
    %v267 = vmul.f32 %v163, %v266
    %v268 = vrcp.pop %v248
    %v269 = vmul.f32 %v166, %v268
    %v270 = vrcp.pop %v251
    %v271 = vmul.f32 %v169, %v270
    %v272 = vrcp.pop %v254
    %v273 = vmul.f32 %v172, %v272
    %v274 = vrcp.pop %v257
    %v275 = vmul.f32 %v175, %v274
    %v276 = vrcp.pop %v260
    %v277 = vmul.f32 %v178, %v276
    %v278 = vrcp.pop %v263
    %v279 = vmul.f32 %v181, %v278
    %vm280 = vcmask 7168
    %v281 = vsel %vm280, %v265, 0.0
    %v282 = vsel %vm280, %v267, 0.0
    %v283 = vadd.f32 %v281, %v282
    %v284 = vsel %vm280, %v269, 0.0
    %v285 = vadd.f32 %v283, %v284
    %v286 = vsel %vm280, %v271, 0.0
    %v287 = vadd.f32 %v285, %v286
    %v288 = vsel %vm280, %v273, 0.0
    %v289 = vadd.f32 %v287, %v288
    %v290 = vsel %vm280, %v275, 0.0
    %v291 = vadd.f32 %v289, %v290
    %v292 = vsel %vm280, %v277, 0.0
    %v293 = vadd.f32 %v291, %v292
    %v294 = vsel %vm280, %v279, 0.0
    %v295 = vadd.f32 %v293, %v294
    %296 = vadd.xlane.f32.xlu0 %v295
    %v297 = vpop.xlane.xlu0 %296
    %v298 = vrot.slane %v297, 4
    %v299 = vadd.f32 %v297, %v298
    %v300 = vrot.slane %v299, 2
    %v301 = vadd.f32 %v299, %v300
    %v302 = vrot.slane %v301, 1
    %v303 = vadd.f32 %v301, %v302
    %s304 = vtos %v303
    %s305 = smul.f32 %s304, 0.015625
    %s306 = scalar_lea.smem [#allocation8], 0
    %307 = sst [smem:[%s306]] %s305
    // Predicated region
    $region22: #{r2loss.1} parent=1 // pred_check
      _
    $region23: #{r2loss.1} parent=1 // pred_check_branch
      %309 = sbr.rel (0) target = $region25
    $region24: #{r2loss.1} parent=1 // pred_region
      %s311 = ssub.s32 16, 16
      %312 = vsyncadd [#allocation5], %s311
      %315 = dma.smem_to_hbm [#allocation8], 16, %s3, [#allocation5]
    $region25: #{r2loss.1} parent=1 // pred_fallthru
      _
    // Predicated region
    $region26: #{r2loss.1} parent=1 // pred_check
      _
    $region27: #{r2loss.1} parent=1 // pred_check_branch
      %317 = sbr.rel (0) target = $region29
    $region28: #{r2loss.1} parent=1 // pred_region
      %318 = dma.done [#allocation5], 16
    $region29: #{r2loss.1} parent=1 // pred_fallthru
      _
    %319 = sfence
    %320 = vsyncpa [#allocation4], 1
    %321 = vsyncpa [#allocation7], 1
    %322 = vsyncpa [#allocation5], 1

</llo_original>
